<compile_context>
chip_gen: v7x
topology: tpu7x:2x2x1
jax: 0.10.0
libtpu: 0.0.40
codegen_flags: <defaults>
</compile_context>

<pallas_src>
import functools

import jax
import jax.numpy as jnp
from jax.experimental import pallas as pl
from jax.experimental.pallas import tpu as pltpu


def _fusion_kernel(q_ref, v_ref, g_ref, wc_ref, w2_ref, o_ref, *, T, N):
    BB, D = q_ref.shape          # batch rows handled by this grid step
    dk = wc_ref.shape[1]
    H = w2_ref.shape[1]
    TN = T * N
    rows = BB * TN               # flattened (batch, time, space) rows
    BT = BB * T

    v = v_ref[...]                                                # (rows, D)

    # Fused first stage: h = visual @ (Wv@W1v) + question @ (Wq@W1q).
    h_v = jnp.dot(v, wc_ref[pl.ds(0, D), :],
                  preferred_element_type=jnp.float32)             # (rows, dk)
    h_q = jnp.dot(q_ref[...], wc_ref[pl.ds(D, D), :],
                  preferred_element_type=jnp.float32)             # (BB, dk)

    # Per-batch broadcast add of the question term, then ELU(alpha=1) in fp32.
    h = h_v.reshape(BB, TN, dk) + h_q[:, None, :]
    h = jnp.where(h > 0.0, h, jnp.exp(jnp.minimum(h, 0.0)) - 1.0)
    h = h.reshape(rows, dk)

    logits = jnp.dot(h, w2_ref[...],
                     preferred_element_type=jnp.float32)          # (rows, H)

    # gumbel_softmax(tau=1, hard=True, dim=N): forward value is the one-hot of
    # argmax over N of (logits + gumbel) / tau  (tau hard-coded to 1).
    # H stays on lanes; the reshape only re-splits the sublane dim.
    y = (logits + g_ref[...]).reshape(BT, N, H)

    # argmax over N (ties -> first index; measure-zero with continuous noise).
    max_y = jnp.max(y, axis=1, keepdims=True)                     # (BT, 1, H)
    idx = jax.lax.broadcasted_iota(jnp.int32, (BT, N, H), 1)
    first = jnp.min(jnp.where(y == max_y, idx, jnp.int32(N)),
                    axis=1, keepdims=True)                        # (BT, 1, H)
    hard = (idx == first).astype(jnp.float32)                     # (BT, N, H)
    w = jnp.sum(hard, axis=-1)                                    # (BT, N)

    # v_distill: out[bt] = w[bt] @ v[bt*N:(bt+1)*N].  Route it through the MXU
    # as ONE (BT, rows) @ (rows, D) matmul with a block-diagonal LHS built from
    # iota/where/concat (no lane-merging reshapes).
    row_id = jax.lax.broadcasted_iota(jnp.int32, (BT, N), 0)
    w_big = jnp.concatenate(
        [jnp.where(row_id == j, w, 0.0) for j in range(BT)], axis=1)  # (BT, rows)
    out = jnp.dot(w_big, v, preferred_element_type=jnp.float32)   # (BT, D)

    # Lane-dense store: assemble (BB, T*D) (T*D = 128 lanes here) with static
    # slices + lane concat; the wrapper reshapes back to (B, T, D).
    out_rows = []
    for b in range(BB):
        out_rows.append(jnp.concatenate(
            [out[b * T + t: b * T + t + 1, :] for t in range(T)], axis=1))
    o_ref[...] = jnp.concatenate(out_rows, axis=0).astype(o_ref.dtype)


def _fuse_weights(params):
    # ELU input = v_proj @ W1_v + q_proj @ W1_q
    #           = visual @ (Wv @ W1_v) + question @ (Wq @ W1_q)   (exact algebra)
    w_vh = params["wv"] @ params["w1v"]          # (D, d_k)
    w_qh = params["wq"] @ params["w1q"]          # (D, d_k)
    return w_vh, w_qh


def question_guided_spatial_fusion(question, visual, gumbel_noise, params,
                                   *, batch_block=None):
    B, T, N, D = visual.shape
    dk = params["wq"].shape[1]
    H = params["w2"].shape[1]

    # One grid step by default (all B*T*N rows form one MXU-tile LHS).  On
    # v7x with larger B, set batch_block = B // 2 so each TensorCore gets a
    # "parallel" step; re-budget VMEM tiles against 64 MiB there.
    BB = B if batch_block is None else batch_block
    assert B % BB == 0

    w_vh, w_qh = _fuse_weights(params)
    wcat = jnp.concatenate([w_vh, w_qh], axis=0)             # (2D, d_k)

    visual_flat = visual.reshape(B * T * N, D)               # lane dim: D
    gumbel_flat = gumbel_noise.reshape(B * T * N, H)         # lane dim: H
    rows = BB * T * N

    out_flat = pl.pallas_call(
        functools.partial(_fusion_kernel, T=T, N=N),
        out_shape=jax.ShapeDtypeStruct((B, T * D), jnp.float32),
        grid=(B // BB,),
        in_specs=[
            pl.BlockSpec((BB, D), lambda i: (i, 0)),          # question rows
            pl.BlockSpec((rows, D), lambda i: (i, 0)),        # visual (flat)
            pl.BlockSpec((rows, H), lambda i: (i, 0)),        # gumbel (flat)
            pl.BlockSpec((2 * D, dk), lambda i: (0, 0)),      # fused stage-1 W
            pl.BlockSpec((dk, H), lambda i: (0, 0)),          # W2
        ],
        out_specs=pl.BlockSpec((BB, T * D), lambda i: (i, 0)),  # lane-dense out
        compiler_params=pltpu.CompilerParams(
            dimension_semantics=("parallel",)),
    )(question, visual_flat, gumbel_flat, wcat, params["w2"])

    return out_flat.reshape(B, T, D)


def _reference(question, visual, gumbel_noise, params):
    """Pure-JAX reference of the PyTorch forward (eval mode, same noise).

    Uses the same (mathematically identical) fused weights as the kernel so
    float-association differences cannot flip the discrete argmax.
    """
    w_vh, w_qh = _fuse_weights(params)
    h = (jnp.einsum("btnd,dk->btnk", visual, w_vh)
         + (question @ w_qh)[:, None, None, :])
    h = jnp.where(h > 0, h, jnp.exp(jnp.minimum(h, 0.0)) - 1.0)
    logits = h @ params["w2"]                                    # (B,T,N,H)
    y = logits + gumbel_noise
    hard = jax.nn.one_hot(jnp.argmax(y, axis=2), y.shape[2],
                          axis=2, dtype=jnp.float32)             # (B,T,N,H)
    w = hard.sum(-1)                                             # (B,T,N)
    return jnp.einsum("btn,btnd->btd", w, visual)


def make_params(key, module_dim, num_head):
    d_k = module_dim // num_head
    k = jax.random.split(key, 4)

    def lin(kk, fan_in, fan_out):
        # deterministic synthetic init (~ kaiming-uniform scale)
        bound = 1.0 / jnp.sqrt(fan_in)
        return jax.random.uniform(kk, (fan_in, fan_out), jnp.float32,
                                  -bound, bound)

    w1 = lin(k[2], 2 * d_k, d_k)   # Linear(2*d_k -> d_k), stored as (in, out)
    return {
        "wq": lin(k[0], module_dim, d_k),
        "wv": lin(k[1], module_dim, d_k),
        "w1v": w1[:d_k, :],        # half acting on v_proj (cat order: v, q)
        "w1q": w1[d_k:, :],        # half acting on q_proj
        "w2": lin(k[3], d_k, num_head),
    }


if __name__ == "__main__":
    B, T, N = 2, 4, 16
    module_dim, num_head = 32, 8

    root = jax.random.PRNGKey(0)
    kq, kv, kg, kp = jax.random.split(root, 4)

    question = jax.random.normal(kq, (B, module_dim), jnp.float32)
    visual = jax.random.normal(kv, (B, T, N, module_dim), jnp.float32)
    gumbel_noise = jax.random.gumbel(kg, (B, T, N, num_head), jnp.float32)
    params = make_params(kp, module_dim, num_head)

    out = question_guided_spatial_fusion(question, visual, gumbel_noise, params)
    out = jax.block_until_ready(out)

    ref = _reference(question, visual, gumbel_noise, params)
    assert out.shape == (B, T, module_dim)
    # Tolerance: the kernel's f32 matmuls run on the MXU, which at default
    # precision may evaluate f32 operands via bf16 passes; the spatial
    # selection itself is discrete, so a genuine bug shows up as O(1) errors.
    assert jnp.allclose(out, ref, atol=5e-2, rtol=2e-2), "mismatch vs reference"

    print("KERNEL_OK")
</pallas_src>

<mosaic_0001>
module attributes {stable_mosaic.version = 11 : i64} {
  func.func @_fusion_kernel(%arg0: i32, %arg1: memref<2x32xf32, #tpu.memory_space<vmem>>, %arg2: memref<128x32xf32, #tpu.memory_space<vmem>>, %arg3: memref<128x8xf32, #tpu.memory_space<vmem>>, %arg4: memref<64x4xf32, #tpu.memory_space<vmem>>, %arg5: memref<4x8xf32, #tpu.memory_space<vmem>>, %arg6: memref<2x128xf32, #tpu.memory_space<vmem>>) attributes {dimension_semantics = [#tpu.dimension_semantics<parallel>], iteration_bounds = array<i64: 1>, scalar_prefetch = 0 : i64, scratch_operands = 0 : i64, tpu.core_type = #tpu.core_type<tc>, window_params = [{transform_indices = @transform_0, window_bounds = array<i64: 2, 32>}, {transform_indices = @transform_1, window_bounds = array<i64: 128, 32>}, {transform_indices = @transform_2, window_bounds = array<i64: 128, 8>}, {pipeline_mode = #tpu.pipeline_mode<synchronous>, transform_indices = @transform_3, window_bounds = array<i64: 64, 4>}, {pipeline_mode = #tpu.pipeline_mode<synchronous>, transform_indices = @transform_4, window_bounds = array<i64: 4, 8>}, {transform_indices = @transform_5, window_bounds = array<i64: 2, 128>}]} {
    %c0 = arith.constant 0 : index
    %c0_0 = arith.constant 0 : index
    %0 = vector.load %arg2[%c0, %c0_0] : memref<128x32xf32, #tpu.memory_space<vmem>>, vector<128x32xf32>
    %c0_1 = arith.constant 0 : index
    %c0_2 = arith.constant 0 : index
    %1 = vector.load %arg4[%c0_1, %c0_2] : memref<64x4xf32, #tpu.memory_space<vmem>>, vector<32x4xf32>
    %cst = arith.constant dense<0.000000e+00> : vector<128x4xf32>
    %2 = tpu.matmul %0, %1, %cst {dimension_numbers = #tpu.dot_dimension_numbers<[1], [0], [0], [1], [0, 0, 1, 1], [], []>} : vector<128x32xf32>, vector<32x4xf32>, vector<128x4xf32> -> vector<128x4xf32>
    %c0_3 = arith.constant 0 : index
    %c0_4 = arith.constant 0 : index
    %3 = vector.load %arg1[%c0_3, %c0_4] : memref<2x32xf32, #tpu.memory_space<vmem>>, vector<2x32xf32>
    %c32 = arith.constant 32 : index
    %c0_5 = arith.constant 0 : index
    %4 = vector.load %arg4[%c32, %c0_5] : memref<64x4xf32, #tpu.memory_space<vmem>>, vector<32x4xf32>
    %cst_6 = arith.constant dense<0.000000e+00> : vector<2x4xf32>
    %5 = tpu.matmul %3, %4, %cst_6 {dimension_numbers = #tpu.dot_dimension_numbers<[1], [0], [0], [1], [0, 0, 1, 1], [], []>} : vector<2x32xf32>, vector<32x4xf32>, vector<2x4xf32> -> vector<2x4xf32>
    %6 = vector.shape_cast %2 : vector<128x4xf32> to vector<2x64x4xf32>
    %7 = vector.shape_cast %5 : vector<2x4xf32> to vector<2x1x4xf32>
    %8 = vector.broadcast %7 : vector<2x1x4xf32> to vector<2x64x4xf32>
    %9 = arith.addf %6, %8 : vector<2x64x4xf32>
    %cst_7 = arith.constant 0.000000e+00 : f32
    %10 = vector.broadcast %cst_7 : f32 to vector<2x64x4xf32>
    %11 = arith.cmpf ogt, %9, %10 : vector<2x64x4xf32>
    %cst_8 = arith.constant 0.000000e+00 : f32
    %12 = vector.broadcast %cst_8 : f32 to vector<2x64x4xf32>
    %13 = arith.minimumf %9, %12 : vector<2x64x4xf32>
    %14 = math.exp %13 : vector<2x64x4xf32>
    %cst_9 = arith.constant 1.000000e+00 : f32
    %15 = vector.broadcast %cst_9 : f32 to vector<2x64x4xf32>
    %16 = arith.subf %14, %15 : vector<2x64x4xf32>
    %17 = arith.select %11, %9, %16 : vector<2x64x4xi1>, vector<2x64x4xf32>
    %18 = vector.shape_cast %17 : vector<2x64x4xf32> to vector<128x4xf32>
    %c0_10 = arith.constant 0 : index
    %c0_11 = arith.constant 0 : index
    %19 = vector.load %arg5[%c0_10, %c0_11] : memref<4x8xf32, #tpu.memory_space<vmem>>, vector<4x8xf32>
    %cst_12 = arith.constant dense<0.000000e+00> : vector<128x8xf32>
    %20 = tpu.matmul %18, %19, %cst_12 {dimension_numbers = #tpu.dot_dimension_numbers<[1], [0], [0], [1], [0, 0, 1, 1], [], []>} : vector<128x4xf32>, vector<4x8xf32>, vector<128x8xf32> -> vector<128x8xf32>
    %c0_13 = arith.constant 0 : index
    %c0_14 = arith.constant 0 : index
    %21 = vector.load %arg3[%c0_13, %c0_14] : memref<128x8xf32, #tpu.memory_space<vmem>>, vector<128x8xf32>
    %22 = arith.addf %20, %21 : vector<128x8xf32>
    %23 = vector.shape_cast %22 : vector<128x8xf32> to vector<8x16x8xf32>
    %cst_15 = arith.constant dense<0xFF800000> : vector<8x8xf32>
    %24 = vector.multi_reduction <maximumf>, %23, %cst_15 [1] : vector<8x16x8xf32> to vector<8x8xf32>
    %25 = vector.shape_cast %24 : vector<8x8xf32> to vector<8x1x8xf32>
    %26 = tpu.iota {dimensions = array<i32: 1>} : vector<8x16x8xi32>
    %27 = vector.broadcast %25 : vector<8x1x8xf32> to vector<8x16x8xf32>
    %28 = arith.cmpf oeq, %23, %27 : vector<8x16x8xf32>
    %c16_i32 = arith.constant 16 : i32
    %29 = vector.broadcast %c16_i32 : i32 to vector<8x16x8xi32>
    %30 = arith.select %28, %26, %29 : vector<8x16x8xi1>, vector<8x16x8xi32>
    %cst_16 = arith.constant dense<2147483647> : vector<8x8xi32>
    %31 = vector.multi_reduction <minsi>, %30, %cst_16 [1] : vector<8x16x8xi32> to vector<8x8xi32>
    %32 = vector.shape_cast %31 : vector<8x8xi32> to vector<8x1x8xi32>
    %33 = vector.broadcast %32 : vector<8x1x8xi32> to vector<8x16x8xi32>
    %34 = arith.cmpi eq, %26, %33 : vector<8x16x8xi32>
    %35 = arith.extui %34 : vector<8x16x8xi1> to vector<8x16x8xi32>
    %36 = arith.sitofp %35 : vector<8x16x8xi32> to vector<8x16x8xf32>
    %cst_17 = arith.constant dense<0.000000e+00> : vector<8x16xf32>
    %37 = vector.multi_reduction <add>, %36, %cst_17 [2] : vector<8x16x8xf32> to vector<8x16xf32>
    %38 = tpu.iota {dimensions = array<i32: 0>} : vector<8x16xi32>
    %c0_i32 = arith.constant 0 : i32
    %39 = vector.broadcast %c0_i32 : i32 to vector<8x16xi32>
    %40 = arith.cmpi eq, %38, %39 : vector<8x16xi32>
    %cst_18 = arith.constant 0.000000e+00 : f32
    %41 = vector.broadcast %cst_18 : f32 to vector<8x16xf32>
    %42 = arith.select %40, %37, %41 : vector<8x16xi1>, vector<8x16xf32>
    %c1_i32 = arith.constant 1 : i32
    %43 = vector.broadcast %c1_i32 : i32 to vector<8x16xi32>
    %44 = arith.cmpi eq, %38, %43 : vector<8x16xi32>
    %cst_19 = arith.constant 0.000000e+00 : f32
    %45 = vector.broadcast %cst_19 : f32 to vector<8x16xf32>
    %46 = arith.select %44, %37, %45 : vector<8x16xi1>, vector<8x16xf32>
    %c2_i32 = arith.constant 2 : i32
    %47 = vector.broadcast %c2_i32 : i32 to vector<8x16xi32>
    %48 = arith.cmpi eq, %38, %47 : vector<8x16xi32>
    %cst_20 = arith.constant 0.000000e+00 : f32
    %49 = vector.broadcast %cst_20 : f32 to vector<8x16xf32>
    %50 = arith.select %48, %37, %49 : vector<8x16xi1>, vector<8x16xf32>
    %c3_i32 = arith.constant 3 : i32
    %51 = vector.broadcast %c3_i32 : i32 to vector<8x16xi32>
    %52 = arith.cmpi eq, %38, %51 : vector<8x16xi32>
    %cst_21 = arith.constant 0.000000e+00 : f32
    %53 = vector.broadcast %cst_21 : f32 to vector<8x16xf32>
    %54 = arith.select %52, %37, %53 : vector<8x16xi1>, vector<8x16xf32>
    %c4_i32 = arith.constant 4 : i32
    %55 = vector.broadcast %c4_i32 : i32 to vector<8x16xi32>
    %56 = arith.cmpi eq, %38, %55 : vector<8x16xi32>
    %cst_22 = arith.constant 0.000000e+00 : f32
    %57 = vector.broadcast %cst_22 : f32 to vector<8x16xf32>
    %58 = arith.select %56, %37, %57 : vector<8x16xi1>, vector<8x16xf32>
    %c5_i32 = arith.constant 5 : i32
    %59 = vector.broadcast %c5_i32 : i32 to vector<8x16xi32>
    %60 = arith.cmpi eq, %38, %59 : vector<8x16xi32>
    %cst_23 = arith.constant 0.000000e+00 : f32
    %61 = vector.broadcast %cst_23 : f32 to vector<8x16xf32>
    %62 = arith.select %60, %37, %61 : vector<8x16xi1>, vector<8x16xf32>
    %c6_i32 = arith.constant 6 : i32
    %63 = vector.broadcast %c6_i32 : i32 to vector<8x16xi32>
    %64 = arith.cmpi eq, %38, %63 : vector<8x16xi32>
    %cst_24 = arith.constant 0.000000e+00 : f32
    %65 = vector.broadcast %cst_24 : f32 to vector<8x16xf32>
    %66 = arith.select %64, %37, %65 : vector<8x16xi1>, vector<8x16xf32>
    %c7_i32 = arith.constant 7 : i32
    %67 = vector.broadcast %c7_i32 : i32 to vector<8x16xi32>
    %68 = arith.cmpi eq, %38, %67 : vector<8x16xi32>
    %cst_25 = arith.constant 0.000000e+00 : f32
    %69 = vector.broadcast %cst_25 : f32 to vector<8x16xf32>
    %70 = arith.select %68, %37, %69 : vector<8x16xi1>, vector<8x16xf32>
    %71 = tpu.concatenate %42, %46, %50, %54, %58, %62, %66, %70 in 1 : vector<8x16xf32>, vector<8x16xf32>, vector<8x16xf32>, vector<8x16xf32>, vector<8x16xf32>, vector<8x16xf32>, vector<8x16xf32>, vector<8x16xf32> -> vector<8x128xf32>
    %cst_26 = arith.constant dense<0.000000e+00> : vector<8x32xf32>
    %72 = tpu.matmul %71, %0, %cst_26 {dimension_numbers = #tpu.dot_dimension_numbers<[1], [0], [0], [1], [0, 0, 1, 1], [], []>} : vector<8x128xf32>, vector<128x32xf32>, vector<8x32xf32> -> vector<8x32xf32>
    %73 = vector.extract_strided_slice %72 {offsets = [0, 0], sizes = [1, 32], strides = [1, 1]} : vector<8x32xf32> to vector<1x32xf32>
    %74 = vector.extract_strided_slice %72 {offsets = [1, 0], sizes = [1, 32], strides = [1, 1]} : vector<8x32xf32> to vector<1x32xf32>
    %75 = vector.extract_strided_slice %72 {offsets = [2, 0], sizes = [1, 32], strides = [1, 1]} : vector<8x32xf32> to vector<1x32xf32>
    %76 = vector.extract_strided_slice %72 {offsets = [3, 0], sizes = [1, 32], strides = [1, 1]} : vector<8x32xf32> to vector<1x32xf32>
    %77 = tpu.concatenate %73, %74, %75, %76 in 1 : vector<1x32xf32>, vector<1x32xf32>, vector<1x32xf32>, vector<1x32xf32> -> vector<1x128xf32>
    %78 = vector.extract_strided_slice %72 {offsets = [4, 0], sizes = [1, 32], strides = [1, 1]} : vector<8x32xf32> to vector<1x32xf32>
    %79 = vector.extract_strided_slice %72 {offsets = [5, 0], sizes = [1, 32], strides = [1, 1]} : vector<8x32xf32> to vector<1x32xf32>
    %80 = vector.extract_strided_slice %72 {offsets = [6, 0], sizes = [1, 32], strides = [1, 1]} : vector<8x32xf32> to vector<1x32xf32>
    %81 = vector.extract_strided_slice %72 {offsets = [7, 0], sizes = [1, 32], strides = [1, 1]} : vector<8x32xf32> to vector<1x32xf32>
    %82 = tpu.concatenate %78, %79, %80, %81 in 1 : vector<1x32xf32>, vector<1x32xf32>, vector<1x32xf32>, vector<1x32xf32> -> vector<1x128xf32>
    %83 = tpu.concatenate %77, %82 in 0 : vector<1x128xf32>, vector<1x128xf32> -> vector<2x128xf32>
    %c0_27 = arith.constant 0 : index
    %c0_28 = arith.constant 0 : index
    %84 = vector.load %arg6[%c0_27, %c0_28] : memref<2x128xf32, #tpu.memory_space<vmem>>, vector<2x128xf32>
    tpu.vector_store %arg6[%c0_27, %c0_28], %83 {strides = array<i32>} : memref<2x128xf32, #tpu.memory_space<vmem>>, vector<2x128xf32>,
    return
  }
  func.func @transform_0(%arg0: i32) -> (i32, i32) {
    %c0_i32 = arith.constant 0 : i32
    %c0_i32_0 = arith.constant 0 : i32
    return %arg0, %c0_i32 : i32, i32
  }
  func.func @transform_1(%arg0: i32) -> (i32, i32) {
    %c0_i32 = arith.constant 0 : i32
    %c0_i32_0 = arith.constant 0 : i32
    return %arg0, %c0_i32 : i32, i32
  }
  func.func @transform_2(%arg0: i32) -> (i32, i32) {
    %c0_i32 = arith.constant 0 : i32
    %c0_i32_0 = arith.constant 0 : i32
    return %arg0, %c0_i32 : i32, i32
  }
  func.func @transform_3(%arg0: i32) -> (i32, i32) {
    %c0_i32 = arith.constant 0 : i32
    %c0_i32_0 = arith.constant 0 : i32
    %c0_i32_1 = arith.constant 0 : i32
    return %c0_i32, %c0_i32_0 : i32, i32
  }
  func.func @transform_4(%arg0: i32) -> (i32, i32) {
    %c0_i32 = arith.constant 0 : i32
    %c0_i32_0 = arith.constant 0 : i32
    %c0_i32_1 = arith.constant 0 : i32
    return %c0_i32, %c0_i32_0 : i32, i32
  }
  func.func @transform_5(%arg0: i32) -> (i32, i32) {
    %c0_i32 = arith.constant 0 : i32
    %c0_i32_0 = arith.constant 0 : i32
    return %arg0, %c0_i32 : i32, i32
  }
}

</mosaic_0001>

<llo_original>
// kernel: tpu_custom_call.1
$region0: #{tpu_custom_call.1}
  #allocation0 [shape = 'u32[]', space=smem, size = 0x4, offset = 0x4, fixed_abs, tag = 'smem constant byte address 0x4 - core index']
  #allocation1 [shape = 'u32[144,128]{1,0:T(1,128)}', space=vmem, size = 0x12000, scoped, tag = 'internal scratch']
  %s0 = inlined_call_operand.vmem [shape: f32[2,32], index: 0, kind: input, shape index: {}]
  %s1 = inlined_call_operand.vmem [shape: f32[128,32], index: 1, kind: input, shape index: {}]
  %s2 = inlined_call_operand.vmem [shape: f32[128,8], index: 2, kind: input, shape index: {}]
  %s3 = inlined_call_operand.vmem [shape: f32[64,4], index: 3, kind: input, shape index: {}]
  %s4 = inlined_call_operand.vmem [shape: f32[4,8], index: 4, kind: input, shape index: {}]
  %s5 = inlined_call_operand.hbm [shape: f32[2,128], index: 5, kind: output, shape index: {}]
  %s6 = sld [smem:[#allocation0]]
  $region30: #{tpu_custom_call.1} parent=0
    _
  %s8 = ssub.s32 1, %s6
  %s9 = scalar_select 0, %s8, %s6
  $region1: #{tpu_custom_call.1} parent=0
    #allocation2 [shape = 'u8[1024]{0}', space=vmem, size = 0x400, scoped, tag = 'output window, operand 0, single buffered']
    #allocation3 [shape = 's32[1]{0}', space=sflag, size = 0x4, scoped, tag = 'scoped memory for tpu_custom_call.1']
    %10 = vsyncpa [#allocation3], 0
    // Predicated region
    $region2: #{tpu_custom_call.1} parent=1 // pred_check
      _
    $region3: #{tpu_custom_call.1} parent=1 // pred_check_branch
      %12 = sbr.rel (0) target = $region5
    $region4: #{tpu_custom_call.1} parent=1 // pred_region
      _
    $region5: #{tpu_custom_call.1} parent=1 // pred_fallthru
      _
    // Predicated region
    $region6: #{tpu_custom_call.1} parent=1 // pred_check
      _
    $region7: #{tpu_custom_call.1} parent=1 // pred_check_branch
      %14 = sbr.rel (0) target = $region9
    $region8: #{tpu_custom_call.1} parent=1 // pred_region
      _
    $region9: #{tpu_custom_call.1} parent=1 // pred_fallthru
      _
    // Predicated region
    $region10: #{tpu_custom_call.1} parent=1 // pred_check
      _
    $region11: #{tpu_custom_call.1} parent=1 // pred_check_branch
      %16 = sbr.rel (0) target = $region13
    $region12: #{tpu_custom_call.1} parent=1 // pred_region
      _
    $region13: #{tpu_custom_call.1} parent=1 // pred_fallthru
      _
    // Predicated region
    $region14: #{tpu_custom_call.1} parent=1 // pred_check
      _
    $region15: #{tpu_custom_call.1} parent=1 // pred_check_branch
      %18 = sbr.rel (0) target = $region17
    $region16: #{tpu_custom_call.1} parent=1 // pred_region
      _
    $region17: #{tpu_custom_call.1} parent=1 // pred_fallthru
      _
    // Predicated region
    $region18: #{tpu_custom_call.1} parent=1 // pred_check
      _
    $region19: #{tpu_custom_call.1} parent=1 // pred_check_branch
      %20 = sbr.rel (0) target = $region21
    $region20: #{tpu_custom_call.1} parent=1 // pred_region
      _
    $region21: #{tpu_custom_call.1} parent=1 // pred_fallthru
      _
    %v21 = vld [vmem:[%s1] sm:$0xff]
    %v22 = vld [vmem:[%s1 + $0x8] sm:$0xff]
    %v23 = vld [vmem:[%s1 + $0x10] sm:$0xff]
    %v24 = vld [vmem:[%s1 + $0x18] sm:$0xff]
    %v25 = vld [vmem:[%s1 + $0x20] sm:$0xff]
    %v26 = vld [vmem:[%s1 + $0x28] sm:$0xff]
    %v27 = vld [vmem:[%s1 + $0x30] sm:$0xff]
    %v28 = vld [vmem:[%s1 + $0x38] sm:$0xff]
    %v29 = vld [vmem:[%s1 + $0x40] sm:$0xff]
    %v30 = vld [vmem:[%s1 + $0x48] sm:$0xff]
    %v31 = vld [vmem:[%s1 + $0x50] sm:$0xff]
    %v32 = vld [vmem:[%s1 + $0x58] sm:$0xff]
    %v33 = vld [vmem:[%s1 + $0x60] sm:$0xff]
    %v34 = vld [vmem:[%s1 + $0x68] sm:$0xff]
    %v35 = vld [vmem:[%s1 + $0x70] sm:$0xff]
    %v36 = vld [vmem:[%s1 + $0x78] sm:$0xff]
    %v37 = vld [vmem:[%s3] sm:$0xff]
    %v38 = vld [vmem:[%s3 + $0x8] sm:$0xff]
    %v39 = vld [vmem:[%s3 + $0x10] sm:$0xff]
    %v40 = vld [vmem:[%s3 + $0x18] sm:$0xff]
    %vm41 = vcmask 261120
    %v43 = vsel %vm41, %v21, 0
    %v46 = vsel %vm41, %v22, 0
    %v49 = vsel %vm41, %v23, 0
    %v52 = vsel %vm41, %v24, 0
    %v55 = vsel %vm41, %v25, 0
    %v58 = vsel %vm41, %v26, 0
    %v61 = vsel %vm41, %v27, 0
    %v64 = vsel %vm41, %v28, 0
    %v67 = vsel %vm41, %v29, 0
    %v70 = vsel %vm41, %v30, 0
    %v73 = vsel %vm41, %v31, 0
    %v76 = vsel %vm41, %v32, 0
    %v79 = vsel %vm41, %v33, 0
    %v82 = vsel %vm41, %v34, 0
    %v85 = vsel %vm41, %v35, 0
    %v88 = vsel %vm41, %v36, 0
    %90 = vmatprep.subr.mxu0 0.0
    %91 = vmatpush1.msra.mxu0 %v37
    %92 = vmatprep.subr.mxu0 0.0
    %93 = vmatpush1.msra.mxu0 %v38
    %94 = vmatprep.subr.mxu0 0.0
    %95 = vmatpush1.msra.mxu0 %v39
    %96 = vmatprep.subr.mxu0 0.0
    %97 = vmatpush1.msra.mxu0 %v40
    %98 = vmatprep.subr.mxu0 0.0
    %99 = vmatpush1.msra.mxu0 0.0
    %100 = vmatprep.subr.mxu0 0.0
    %101 = vmatpush1.msra.mxu0 0.0
    %102 = vmatprep.subr.mxu0 0.0
    %103 = vmatpush1.msra.mxu0 0.0
    %104 = vmatprep.subr.mxu0 0.0
    %105 = vmatpush1.msra.mxu0 0.0
    %106 = vmatprep.subr.mxu0 0.0
    %107 = vmatpush1.msra.mxu0 0.0
    %108 = vmatprep.subr.mxu0 0.0
    %109 = vmatpush1.msra.mxu0 0.0
    %110 = vmatprep.subr.mxu0 0.0
    %111 = vmatpush1.msra.mxu0 0.0
    %112 = vmatprep.subr.mxu0 0.0
    %113 = vmatpush1.msra.mxu0 0.0
    %114 = vmatprep.subr.mxu0 0.0
    %115 = vmatpush1.msra.mxu0 0.0
    %116 = vmatprep.subr.mxu0 0.0
    %117 = vmatpush1.msra.mxu0 0.0
    %118 = vmatprep.subr.mxu0 0.0
    %119 = vmatpush1.msra.mxu0 0.0
    %120 = vmatprep.subr.mxu0 0.0
    %121 = vmatpush1.msra.mxu0 0.0
    %122 = vmatprep.subr.mxu0 0.0
    %123 = vmatpush1.msra.mxu0 0.0
    %124 = vmatprep.subr.mxu0 0.0
    %125 = vmatpush1.msra.mxu0 0.0
    %126 = vmatprep.subr.mxu0 0.0
    %127 = vmatpush1.msra.mxu0 0.0
    %128 = vmatprep.subr.mxu0 0.0
    %129 = vmatpush1.msra.mxu0 0.0
    %130 = vmatprep.subr.mxu0 0.0
    %131 = vmatpush1.msra.mxu0 0.0
    %132 = vmatprep.subr.mxu0 0.0
    %133 = vmatpush1.msra.mxu0 0.0
    %134 = vmatprep.subr.mxu0 0.0
    %135 = vmatpush1.msra.mxu0 0.0
    %136 = vmatprep.subr.mxu0 0.0
    %137 = vmatpush1.msra.mxu0 0.0
    %138 = vmatprep.subr.mxu0 0.0
    %139 = vmatpush1.msra.mxu0 0.0
    %140 = vmatprep.subr.mxu0 0.0
    %141 = vmatpush1.msra.mxu0 0.0
    %142 = vmatprep.subr.mxu0 0.0
    %143 = vmatpush1.msra.mxu0 0.0
    %144 = vmatprep.subr.mxu0 0.0
    %145 = vmatpush1.msra.mxu0 0.0
    %146 = vmatprep.subr.mxu0 0.0
    %147 = vmatpush1.msra.mxu0 0.0
    %148 = vmatprep.subr.mxu0 0.0
    %149 = vmatpush1.msra.mxu0 0.0
    %150 = vmatprep.subr.mxu0 0.0
    %151 = vmatpush1.msra.mxu0 0.0
    %152 = vmatprep.subr.mxu0 0.0
    %153 = vmatpush1.msra.mxu0 0.0
    %154 = vmatprep.mubr.f32.mxu0 0.0
    %155 = vmatmul.mubr.f32.gmra.mrb[0].mxu0 %v43
    %v156 = vpop.f32.mrb[0].mxu0
    %v157 = vadd.f32 0.0, %v156
    %v158 = vpop.f32.mrb[0].mxu0
    %159 = vmatprep.mubr.f32.mxu0 0.0
    %160 = vmatmul.mubr.f32.gmra.mrb[0].mxu0 %v46
    %v161 = vpop.f32.mrb[0].mxu0
    %v162 = vadd.f32 0.0, %v161
    %v163 = vpop.f32.mrb[0].mxu0
    %164 = vmatprep.mubr.f32.mxu0 0.0
    %165 = vmatmul.mubr.f32.gmra.mrb[0].mxu0 %v49
    %v166 = vpop.f32.mrb[0].mxu0
    %v167 = vadd.f32 0.0, %v166
    %v168 = vpop.f32.mrb[0].mxu0
    %169 = vmatprep.mubr.f32.mxu0 0.0
    %170 = vmatmul.mubr.f32.gmra.mrb[0].mxu0 %v52
    %v171 = vpop.f32.mrb[0].mxu0
    %v172 = vadd.f32 0.0, %v171
    %v173 = vpop.f32.mrb[0].mxu0
    %174 = vmatprep.mubr.f32.mxu0 0.0
    %175 = vmatmul.mubr.f32.gmra.mrb[0].mxu0 %v55
    %v176 = vpop.f32.mrb[0].mxu0
    %v177 = vadd.f32 0.0, %v176
    %v178 = vpop.f32.mrb[0].mxu0
    %179 = vmatprep.mubr.f32.mxu0 0.0
    %180 = vmatmul.mubr.f32.gmra.mrb[0].mxu0 %v58
    %v181 = vpop.f32.mrb[0].mxu0
    %v182 = vadd.f32 0.0, %v181
    %v183 = vpop.f32.mrb[0].mxu0
    %184 = vmatprep.mubr.f32.mxu0 0.0
    %185 = vmatmul.mubr.f32.gmra.mrb[0].mxu0 %v61
    %v186 = vpop.f32.mrb[0].mxu0
    %v187 = vadd.f32 0.0, %v186
    %v188 = vpop.f32.mrb[0].mxu0
    %189 = vmatprep.mubr.f32.mxu0 0.0
    %190 = vmatmul.mubr.f32.gmra.mrb[0].mxu0 %v64
    %v191 = vpop.f32.mrb[0].mxu0
    %v192 = vadd.f32 0.0, %v191
    %v193 = vpop.f32.mrb[0].mxu0
    %194 = vmatprep.mubr.f32.mxu0 0.0
    %195 = vmatmul.mubr.f32.gmra.mrb[0].mxu0 %v67
    %v196 = vpop.f32.mrb[0].mxu0
    %v197 = vadd.f32 0.0, %v196
    %v198 = vpop.f32.mrb[0].mxu0
    %199 = vmatprep.mubr.f32.mxu0 0.0
    %200 = vmatmul.mubr.f32.gmra.mrb[0].mxu0 %v70
    %v201 = vpop.f32.mrb[0].mxu0
    %v202 = vadd.f32 0.0, %v201
    %v203 = vpop.f32.mrb[0].mxu0
    %204 = vmatprep.mubr.f32.mxu0 0.0
    %205 = vmatmul.mubr.f32.gmra.mrb[0].mxu0 %v73
    %v206 = vpop.f32.mrb[0].mxu0
    %v207 = vadd.f32 0.0, %v206
    %v208 = vpop.f32.mrb[0].mxu0
    %209 = vmatprep.mubr.f32.mxu0 0.0
    %210 = vmatmul.mubr.f32.gmra.mrb[0].mxu0 %v76
    %v211 = vpop.f32.mrb[0].mxu0
    %v212 = vadd.f32 0.0, %v211
    %v213 = vpop.f32.mrb[0].mxu0
    %214 = vmatprep.mubr.f32.mxu0 0.0
    %215 = vmatmul.mubr.f32.gmra.mrb[0].mxu0 %v79
    %v216 = vpop.f32.mrb[0].mxu0
    %v217 = vadd.f32 0.0, %v216
    %v218 = vpop.f32.mrb[0].mxu0
    %219 = vmatprep.mubr.f32.mxu0 0.0
    %220 = vmatmul.mubr.f32.gmra.mrb[0].mxu0 %v82
    %v221 = vpop.f32.mrb[0].mxu0
    %v222 = vadd.f32 0.0, %v221
    %v223 = vpop.f32.mrb[0].mxu0
    %224 = vmatprep.mubr.f32.mxu0 0.0
    %225 = vmatmul.mubr.f32.gmra.mrb[0].mxu0 %v85
    %v226 = vpop.f32.mrb[0].mxu0
    %v227 = vadd.f32 0.0, %v226
    %v228 = vpop.f32.mrb[0].mxu0
    %229 = vmatprep.mubr.f32.mxu0 0.0
    %230 = vmatmul.mubr.f32.gmra.mrb[0].mxu0 %v88
    %v231 = vpop.f32.mrb[0].mxu0
    %v232 = vadd.f32 0.0, %v231
    %v233 = vpop.f32.mrb[0].mxu0
    %234 = vdwg.mxu0
    %v235 = vld [vmem:[%s0] sm:$0x3]
    %v236 = vld [vmem:[%s3 + $0x20] sm:$0xff]
    %v237 = vld [vmem:[%s3 + $0x28] sm:$0xff]
    %v238 = vld [vmem:[%s3 + $0x30] sm:$0xff]
    %v239 = vld [vmem:[%s3 + $0x38] sm:$0xff]
    %v241 = vsel %vm41, %v235, 0
    %243 = vmatprep.subr.mxu0 0.0
    %244 = vmatpush1.msra.mxu0 %v236
    %245 = vmatprep.subr.mxu0 0.0
    %246 = vmatpush1.msra.mxu0 %v237
    %247 = vmatprep.subr.mxu0 0.0
    %248 = vmatpush1.msra.mxu0 %v238
    %249 = vmatprep.subr.mxu0 0.0
    %250 = vmatpush1.msra.mxu0 %v239
    %251 = vmatprep.subr.mxu0 0.0
    %252 = vmatpush1.msra.mxu0 0.0
    %253 = vmatprep.subr.mxu0 0.0
    %254 = vmatpush1.msra.mxu0 0.0
    %255 = vmatprep.subr.mxu0 0.0
    %256 = vmatpush1.msra.mxu0 0.0
    %257 = vmatprep.subr.mxu0 0.0
    %258 = vmatpush1.msra.mxu0 0.0
    %259 = vmatprep.subr.mxu0 0.0
    %260 = vmatpush1.msra.mxu0 0.0
    %261 = vmatprep.subr.mxu0 0.0
    %262 = vmatpush1.msra.mxu0 0.0
    %263 = vmatprep.subr.mxu0 0.0
    %264 = vmatpush1.msra.mxu0 0.0
    %265 = vmatprep.subr.mxu0 0.0
    %266 = vmatpush1.msra.mxu0 0.0
    %267 = vmatprep.subr.mxu0 0.0
    %268 = vmatpush1.msra.mxu0 0.0
    %269 = vmatprep.subr.mxu0 0.0
    %270 = vmatpush1.msra.mxu0 0.0
    %271 = vmatprep.subr.mxu0 0.0
    %272 = vmatpush1.msra.mxu0 0.0
    %273 = vmatprep.subr.mxu0 0.0
    %274 = vmatpush1.msra.mxu0 0.0
    %275 = vmatprep.subr.mxu0 0.0
    %276 = vmatpush1.msra.mxu0 0.0
    %277 = vmatprep.subr.mxu0 0.0
    %278 = vmatpush1.msra.mxu0 0.0
    %279 = vmatprep.subr.mxu0 0.0
    %280 = vmatpush1.msra.mxu0 0.0
    %281 = vmatprep.subr.mxu0 0.0
    %282 = vmatpush1.msra.mxu0 0.0
    %283 = vmatprep.subr.mxu0 0.0
    %284 = vmatpush1.msra.mxu0 0.0
    %285 = vmatprep.subr.mxu0 0.0
    %286 = vmatpush1.msra.mxu0 0.0
    %287 = vmatprep.subr.mxu0 0.0
    %288 = vmatpush1.msra.mxu0 0.0
    %289 = vmatprep.subr.mxu0 0.0
    %290 = vmatpush1.msra.mxu0 0.0
    %291 = vmatprep.subr.mxu0 0.0
    %292 = vmatpush1.msra.mxu0 0.0
    %293 = vmatprep.subr.mxu0 0.0
    %294 = vmatpush1.msra.mxu0 0.0
    %295 = vmatprep.subr.mxu0 0.0
    %296 = vmatpush1.msra.mxu0 0.0
    %297 = vmatprep.subr.mxu0 0.0
    %298 = vmatpush1.msra.mxu0 0.0
    %299 = vmatprep.subr.mxu0 0.0
    %300 = vmatpush1.msra.mxu0 0.0
    %301 = vmatprep.subr.mxu0 0.0
    %302 = vmatpush1.msra.mxu0 0.0
    %303 = vmatprep.subr.mxu0 0.0
    %304 = vmatpush1.msra.mxu0 0.0
    %305 = vmatprep.subr.mxu0 0.0
    %306 = vmatpush1.msra.mxu0 0.0
    %307 = vmatprep.mubr.f32.mxu0 0.0
    %308 = vmatmul.mubr.f32.gmra.mrb[0].mxu0 %v241
    %v309 = vpop.f32.mrb[0].mxu0
    %v310 = vadd.f32 0.0, %v309
    %v311 = vpop.f32.mrb[0].mxu0
    %312 = vdwg.mxu0
    %v315 = vunpack.c.l.s4 1966171168
    %v316 = vunpack.c.0.s8 %v315
    %v317 = vlaneseq
    %v318 = vshrl.u32 %v317, 7
    %v319 = vsub.s32 %v316, %v318
    %v320 = vrot.slane %v310, %v319
    %v321 = vcombine.high %v320, %v320
    %v323 = vunpack.c.l.s4 1966171168
    %v324 = vunpack.c.0.s8 %v323
    %v325 = vlaneseq
    %v326 = vshrl.u32 %v325, 7
    %v327 = vsub.s32 %v324, %v326
    %v328 = vrot.slane %v320, %v327
    %v330 = vunpack.c.l.s4 1966171168
    %v331 = vunpack.c.0.s8 %v330
    %v332 = vlaneseq
    %v333 = vshrl.u32 %v332, 7
    %v334 = vsub.s32 %v331, %v333
    %v335 = vrot.slane %v321, %v334
    %v336 = vlaneseq
    %v337 = vshrl.u32 %v336, 7
    %v338 = vsub.s32 0, %v337
    %v339 = vrot.slane %v328, %v338
    %v340 = vlaneseq
    %v341 = vshrl.u32 %v340, 7
    %v342 = vsub.s32 0, %v341
    %v343 = vrot.slane %v335, %v342
    %v346 = vadd.f32 %v157, %v339
    %v347 = vadd.f32 %v162, %v339
    %v348 = vadd.f32 %v167, %v339
    %v349 = vadd.f32 %v172, %v339
    %v350 = vadd.f32 %v177, %v339
    %v351 = vadd.f32 %v182, %v339
    %v352 = vadd.f32 %v187, %v339
    %v353 = vadd.f32 %v192, %v339
    %v354 = vadd.f32 %v197, %v343
    %v355 = vadd.f32 %v202, %v343
    %v356 = vadd.f32 %v207, %v343
    %v357 = vadd.f32 %v212, %v343
    %v358 = vadd.f32 %v217, %v343
    %v359 = vadd.f32 %v222, %v343
    %v360 = vadd.f32 %v227, %v343
    %v361 = vadd.f32 %v232, %v343
    %vm362 = vcmp.gt.f32.partialorder %v346, 0.0
    %vm363 = vcmp.gt.f32.partialorder %v347, 0.0
    %vm364 = vcmp.gt.f32.partialorder %v348, 0.0
    %vm365 = vcmp.gt.f32.partialorder %v349, 0.0
    %vm366 = vcmp.gt.f32.partialorder %v350, 0.0
    %vm367 = vcmp.gt.f32.partialorder %v351, 0.0
    %vm368 = vcmp.gt.f32.partialorder %v352, 0.0
    %vm369 = vcmp.gt.f32.partialorder %v353, 0.0
    %vm370 = vcmp.gt.f32.partialorder %v354, 0.0
    %vm371 = vcmp.gt.f32.partialorder %v355, 0.0
    %vm372 = vcmp.gt.f32.partialorder %v356, 0.0
    %vm373 = vcmp.gt.f32.partialorder %v357, 0.0
    %vm374 = vcmp.gt.f32.partialorder %v358, 0.0
    %vm375 = vcmp.gt.f32.partialorder %v359, 0.0
    %vm376 = vcmp.gt.f32.partialorder %v360, 0.0
    %vm377 = vcmp.gt.f32.partialorder %v361, 0.0
    %v378 = vmin.f32 %v346, 0.0
    %v379 = vmin.f32 %v347, 0.0
    %v380 = vmin.f32 %v348, 0.0
    %v381 = vmin.f32 %v349, 0.0
    %v382 = vmin.f32 %v350, 0.0
    %v383 = vmin.f32 %v351, 0.0
    %v384 = vmin.f32 %v352, 0.0
    %v385 = vmin.f32 %v353, 0.0
    %v386 = vmin.f32 %v354, 0.0
    %v387 = vmin.f32 %v355, 0.0
    %v388 = vmin.f32 %v356, 0.0
    %v389 = vmin.f32 %v357, 0.0
    %v390 = vmin.f32 %v358, 0.0
    %v391 = vmin.f32 %v359, 0.0
    %v392 = vmin.f32 %v360, 0.0
    %v393 = vmin.f32 %v361, 0.0
    %v394 = vmul.f32 %v378, 1.442695
    %v395 = vpow.pop %v394
    %v396 = vmul.f32 %v379, 1.442695
    %v397 = vpow.pop %v396
    %v398 = vmul.f32 %v380, 1.442695
    %v399 = vpow.pop %v398
    %v400 = vmul.f32 %v381, 1.442695
    %v401 = vpow.pop %v400
    %v402 = vmul.f32 %v382, 1.442695
    %v403 = vpow.pop %v402
    %v404 = vmul.f32 %v383, 1.442695
    %v405 = vpow.pop %v404
    %v406 = vmul.f32 %v384, 1.442695
    %v407 = vpow.pop %v406
    %v408 = vmul.f32 %v385, 1.442695
    %v409 = vpow.pop %v408
    %v410 = vmul.f32 %v386, 1.442695
    %v411 = vpow.pop %v410
    %v412 = vmul.f32 %v387, 1.442695
    %v413 = vpow.pop %v412
    %v414 = vmul.f32 %v388, 1.442695
    %v415 = vpow.pop %v414
    %v416 = vmul.f32 %v389, 1.442695
    %v417 = vpow.pop %v416
    %v418 = vmul.f32 %v390, 1.442695
    %v419 = vpow.pop %v418
    %v420 = vmul.f32 %v391, 1.442695
    %v421 = vpow.pop %v420
    %v422 = vmul.f32 %v392, 1.442695
    %v423 = vpow.pop %v422
    %v424 = vmul.f32 %v393, 1.442695
    %v425 = vpow.pop %v424
    %v426 = vsub.f32 %v395, 1.0
    %v427 = vsub.f32 %v397, 1.0
    %v428 = vsub.f32 %v399, 1.0
    %v429 = vsub.f32 %v401, 1.0
    %v430 = vsub.f32 %v403, 1.0
    %v431 = vsub.f32 %v405, 1.0
    %v432 = vsub.f32 %v407, 1.0
    %v433 = vsub.f32 %v409, 1.0
    %v434 = vsub.f32 %v411, 1.0
    %v435 = vsub.f32 %v413, 1.0
    %v436 = vsub.f32 %v415, 1.0
    %v437 = vsub.f32 %v417, 1.0
    %v438 = vsub.f32 %v419, 1.0
    %v439 = vsub.f32 %v421, 1.0
    %v440 = vsub.f32 %v423, 1.0
    %v441 = vsub.f32 %v425, 1.0
    %v442 = vsel %vm362, %v346, %v426
    %v443 = vsel %vm363, %v347, %v427
    %v444 = vsel %vm364, %v348, %v428
    %v445 = vsel %vm365, %v349, %v429
    %v446 = vsel %vm366, %v350, %v430
    %v447 = vsel %vm367, %v351, %v431
    %v448 = vsel %vm368, %v352, %v432
    %v449 = vsel %vm369, %v353, %v433
    %v450 = vsel %vm370, %v354, %v434
    %v451 = vsel %vm371, %v355, %v435
    %v452 = vsel %vm372, %v356, %v436
    %v453 = vsel %vm373, %v357, %v437
    %v454 = vsel %vm374, %v358, %v438
    %v455 = vsel %vm375, %v359, %v439
    %v456 = vsel %vm376, %v360, %v440
    %v457 = vsel %vm377, %v361, %v441
    %v458 = vld [vmem:[%s4] sm:$0xf]
    %v459 = vld [vmem:[%s2] sm:$0xff]
    %v460 = vld [vmem:[%s2 + $0x8] sm:$0xff]
    %v461 = vld [vmem:[%s2 + $0x10] sm:$0xff]
    %v462 = vld [vmem:[%s2 + $0x18] sm:$0xff]
    %v463 = vld [vmem:[%s2 + $0x20] sm:$0xff]
    %v464 = vld [vmem:[%s2 + $0x28] sm:$0xff]
    %v465 = vld [vmem:[%s2 + $0x30] sm:$0xff]
    %v466 = vld [vmem:[%s2 + $0x38] sm:$0xff]
    %v467 = vld [vmem:[%s2 + $0x40] sm:$0xff]
    %v468 = vld [vmem:[%s2 + $0x48] sm:$0xff]
    %v469 = vld [vmem:[%s2 + $0x50] sm:$0xff]
    %v470 = vld [vmem:[%s2 + $0x58] sm:$0xff]
    %v471 = vld [vmem:[%s2 + $0x60] sm:$0xff]
    %v472 = vld [vmem:[%s2 + $0x68] sm:$0xff]
    %v473 = vld [vmem:[%s2 + $0x70] sm:$0xff]
    %v474 = vld [vmem:[%s2 + $0x78] sm:$0xff]
    %vm475 = vcmask 31744
    %v477 = vsel %vm475, %v442, 0
    %v480 = vsel %vm475, %v443, 0
    %v483 = vsel %vm475, %v444, 0
    %v486 = vsel %vm475, %v445, 0
    %v489 = vsel %vm475, %v446, 0
    %v492 = vsel %vm475, %v447, 0
    %v495 = vsel %vm475, %v448, 0
    %v498 = vsel %vm475, %v449, 0
    %v501 = vsel %vm475, %v450, 0
    %v504 = vsel %vm475, %v451, 0
    %v507 = vsel %vm475, %v452, 0
    %v510 = vsel %vm475, %v453, 0
    %v513 = vsel %vm475, %v454, 0
    %v516 = vsel %vm475, %v455, 0
    %v519 = vsel %vm475, %v456, 0
    %v522 = vsel %vm475, %v457, 0
    %vm524 = vcmask 1043456
    %v526 = vsel %vm524, %v458, 0
    %528 = vmatprep.subr.mxu0 0.0
    %529 = vmatpush1.msra.mxu0 %v526
    %530 = vmatprep.subr.mxu0 0.0
    %531 = vmatpush1.msra.mxu0 0.0
    %532 = vmatprep.subr.mxu0 0.0
    %533 = vmatpush1.msra.mxu0 0.0
    %534 = vmatprep.subr.mxu0 0.0
    %535 = vmatpush1.msra.mxu0 0.0
    %536 = vmatprep.subr.mxu0 0.0
    %537 = vmatpush1.msra.mxu0 0.0
    %538 = vmatprep.subr.mxu0 0.0
    %539 = vmatpush1.msra.mxu0 0.0
    %540 = vmatprep.subr.mxu0 0.0
    %541 = vmatpush1.msra.mxu0 0.0
    %542 = vmatprep.subr.mxu0 0.0
    %543 = vmatpush1.msra.mxu0 0.0
    %544 = vmatprep.subr.mxu0 0.0
    %545 = vmatpush1.msra.mxu0 0.0
    %546 = vmatprep.subr.mxu0 0.0
    %547 = vmatpush1.msra.mxu0 0.0
    %548 = vmatprep.subr.mxu0 0.0
    %549 = vmatpush1.msra.mxu0 0.0
    %550 = vmatprep.subr.mxu0 0.0
    %551 = vmatpush1.msra.mxu0 0.0
    %552 = vmatprep.subr.mxu0 0.0
    %553 = vmatpush1.msra.mxu0 0.0
    %554 = vmatprep.subr.mxu0 0.0
    %555 = vmatpush1.msra.mxu0 0.0
    %556 = vmatprep.subr.mxu0 0.0
    %557 = vmatpush1.msra.mxu0 0.0
    %558 = vmatprep.subr.mxu0 0.0
    %559 = vmatpush1.msra.mxu0 0.0
    %560 = vmatprep.subr.mxu0 0.0
    %561 = vmatpush1.msra.mxu0 0.0
    %562 = vmatprep.subr.mxu0 0.0
    %563 = vmatpush1.msra.mxu0 0.0
    %564 = vmatprep.subr.mxu0 0.0
    %565 = vmatpush1.msra.mxu0 0.0
    %566 = vmatprep.subr.mxu0 0.0
    %567 = vmatpush1.msra.mxu0 0.0
    %568 = vmatprep.subr.mxu0 0.0
    %569 = vmatpush1.msra.mxu0 0.0
    %570 = vmatprep.subr.mxu0 0.0
    %571 = vmatpush1.msra.mxu0 0.0
    %572 = vmatprep.subr.mxu0 0.0
    %573 = vmatpush1.msra.mxu0 0.0
    %574 = vmatprep.subr.mxu0 0.0
    %575 = vmatpush1.msra.mxu0 0.0
    %576 = vmatprep.subr.mxu0 0.0
    %577 = vmatpush1.msra.mxu0 0.0
    %578 = vmatprep.subr.mxu0 0.0
    %579 = vmatpush1.msra.mxu0 0.0
    %580 = vmatprep.subr.mxu0 0.0
    %581 = vmatpush1.msra.mxu0 0.0
    %582 = vmatprep.subr.mxu0 0.0
    %583 = vmatpush1.msra.mxu0 0.0
    %584 = vmatprep.subr.mxu0 0.0
    %585 = vmatpush1.msra.mxu0 0.0
    %586 = vmatprep.subr.mxu0 0.0
    %587 = vmatpush1.msra.mxu0 0.0
    %588 = vmatprep.subr.mxu0 0.0
    %589 = vmatpush1.msra.mxu0 0.0
    %590 = vmatprep.subr.mxu0 0.0
    %591 = vmatpush1.msra.mxu0 0.0
    %592 = vmatprep.mubr.f32.mxu0 0.0
    %593 = vmatmul.mubr.f32.gmra.mrb[0].mxu0 %v477
    %v594 = vpop.f32.mrb[0].mxu0
    %v595 = vadd.f32 %v459, %v594
    %v596 = vpop.f32.mrb[0].mxu0
    %597 = vmatprep.mubr.f32.mxu0 0.0
    %598 = vmatmul.mubr.f32.gmra.mrb[0].mxu0 %v480
    %v599 = vpop.f32.mrb[0].mxu0
    %v600 = vadd.f32 %v460, %v599
    %v601 = vpop.f32.mrb[0].mxu0
    %602 = vmatprep.mubr.f32.mxu0 0.0
    %603 = vmatmul.mubr.f32.gmra.mrb[0].mxu0 %v483
    %v604 = vpop.f32.mrb[0].mxu0
    %v605 = vadd.f32 %v461, %v604
    %v606 = vpop.f32.mrb[0].mxu0
    %607 = vmatprep.mubr.f32.mxu0 0.0
    %608 = vmatmul.mubr.f32.gmra.mrb[0].mxu0 %v486
    %v609 = vpop.f32.mrb[0].mxu0
    %v610 = vadd.f32 %v462, %v609
    %v611 = vpop.f32.mrb[0].mxu0
    %612 = vmatprep.mubr.f32.mxu0 0.0
    %613 = vmatmul.mubr.f32.gmra.mrb[0].mxu0 %v489
    %v614 = vpop.f32.mrb[0].mxu0
    %v615 = vadd.f32 %v463, %v614
    %v616 = vpop.f32.mrb[0].mxu0
    %617 = vmatprep.mubr.f32.mxu0 0.0
    %618 = vmatmul.mubr.f32.gmra.mrb[0].mxu0 %v492
    %v619 = vpop.f32.mrb[0].mxu0
    %v620 = vadd.f32 %v464, %v619
    %v621 = vpop.f32.mrb[0].mxu0
    %622 = vmatprep.mubr.f32.mxu0 0.0
    %623 = vmatmul.mubr.f32.gmra.mrb[0].mxu0 %v495
    %v624 = vpop.f32.mrb[0].mxu0
    %v625 = vadd.f32 %v465, %v624
    %v626 = vpop.f32.mrb[0].mxu0
    %627 = vmatprep.mubr.f32.mxu0 0.0
    %628 = vmatmul.mubr.f32.gmra.mrb[0].mxu0 %v498
    %v629 = vpop.f32.mrb[0].mxu0
    %v630 = vadd.f32 %v466, %v629
    %v631 = vpop.f32.mrb[0].mxu0
    %632 = vmatprep.mubr.f32.mxu0 0.0
    %633 = vmatmul.mubr.f32.gmra.mrb[0].mxu0 %v501
    %v634 = vpop.f32.mrb[0].mxu0
    %v635 = vadd.f32 %v467, %v634
    %v636 = vpop.f32.mrb[0].mxu0
    %637 = vmatprep.mubr.f32.mxu0 0.0
    %638 = vmatmul.mubr.f32.gmra.mrb[0].mxu0 %v504
    %v639 = vpop.f32.mrb[0].mxu0
    %v640 = vadd.f32 %v468, %v639
    %v641 = vpop.f32.mrb[0].mxu0
    %642 = vmatprep.mubr.f32.mxu0 0.0
    %643 = vmatmul.mubr.f32.gmra.mrb[0].mxu0 %v507
    %v644 = vpop.f32.mrb[0].mxu0
    %v645 = vadd.f32 %v469, %v644
    %v646 = vpop.f32.mrb[0].mxu0
    %647 = vmatprep.mubr.f32.mxu0 0.0
    %648 = vmatmul.mubr.f32.gmra.mrb[0].mxu0 %v510
    %v649 = vpop.f32.mrb[0].mxu0
    %v650 = vadd.f32 %v470, %v649
    %v651 = vpop.f32.mrb[0].mxu0
    %652 = vmatprep.mubr.f32.mxu0 0.0
    %653 = vmatmul.mubr.f32.gmra.mrb[0].mxu0 %v513
    %v654 = vpop.f32.mrb[0].mxu0
    %v655 = vadd.f32 %v471, %v654
    %v656 = vpop.f32.mrb[0].mxu0
    %657 = vmatprep.mubr.f32.mxu0 0.0
    %658 = vmatmul.mubr.f32.gmra.mrb[0].mxu0 %v516
    %v659 = vpop.f32.mrb[0].mxu0
    %v660 = vadd.f32 %v472, %v659
    %v661 = vpop.f32.mrb[0].mxu0
    %662 = vmatprep.mubr.f32.mxu0 0.0
    %663 = vmatmul.mubr.f32.gmra.mrb[0].mxu0 %v519
    %v664 = vpop.f32.mrb[0].mxu0
    %v665 = vadd.f32 %v473, %v664
    %v666 = vpop.f32.mrb[0].mxu0
    %667 = vmatprep.mubr.f32.mxu0 0.0
    %668 = vmatmul.mubr.f32.gmra.mrb[0].mxu0 %v522
    %v669 = vpop.f32.mrb[0].mxu0
    %v670 = vadd.f32 %v474, %v669
    %v671 = vpop.f32.mrb[0].mxu0
    %672 = vdwg.mxu0
    %vm673 = vcmask 64512
    %v674 = vsel %vm673, %v595, -inf
    %v675 = vsel %vm673, %v600, -inf
    %v676 = vmax.f32 %v674, %v675
    %v677 = vrot.slane %v676, 4
    %v678 = vmax.f32 %v676, %v677
    %v679 = vrot.slane %v678, 2
    %v680 = vmax.f32 %v678, %v679
    %v681 = vrot.slane %v680, 1
    %v682 = vmax.f32 %v680, %v681
    %v683 = vsel %vm673, %v605, -inf
    %v684 = vsel %vm673, %v610, -inf
    %v685 = vmax.f32 %v683, %v684
    %v686 = vrot.slane %v685, 4
    %v687 = vmax.f32 %v685, %v686
    %v688 = vrot.slane %v687, 2
    %v689 = vmax.f32 %v687, %v688
    %v690 = vrot.slane %v689, 1
    %v691 = vmax.f32 %v689, %v690
    %v692 = vsel %vm673, %v615, -inf
    %v693 = vsel %vm673, %v620, -inf
    %v694 = vmax.f32 %v692, %v693
    %v695 = vrot.slane %v694, 4
    %v696 = vmax.f32 %v694, %v695
    %v697 = vrot.slane %v696, 2
    %v698 = vmax.f32 %v696, %v697
    %v699 = vrot.slane %v698, 1
    %v700 = vmax.f32 %v698, %v699
    %v701 = vsel %vm673, %v625, -inf
    %v702 = vsel %vm673, %v630, -inf
    %v703 = vmax.f32 %v701, %v702
    %v704 = vrot.slane %v703, 4
    %v705 = vmax.f32 %v703, %v704
    %v706 = vrot.slane %v705, 2
    %v707 = vmax.f32 %v705, %v706
    %v708 = vrot.slane %v707, 1
    %v709 = vmax.f32 %v707, %v708
    %v710 = vsel %vm673, %v635, -inf
    %v711 = vsel %vm673, %v640, -inf
    %v712 = vmax.f32 %v710, %v711
    %v713 = vrot.slane %v712, 4
    %v714 = vmax.f32 %v712, %v713
    %v715 = vrot.slane %v714, 2
    %v716 = vmax.f32 %v714, %v715
    %v717 = vrot.slane %v716, 1
    %v718 = vmax.f32 %v716, %v717
    %v719 = vsel %vm673, %v645, -inf
    %v720 = vsel %vm673, %v650, -inf
    %v721 = vmax.f32 %v719, %v720
    %v722 = vrot.slane %v721, 4
    %v723 = vmax.f32 %v721, %v722
    %v724 = vrot.slane %v723, 2
    %v725 = vmax.f32 %v723, %v724
    %v726 = vrot.slane %v725, 1
    %v727 = vmax.f32 %v725, %v726
    %v728 = vsel %vm673, %v655, -inf
    %v729 = vsel %vm673, %v660, -inf
    %v730 = vmax.f32 %v728, %v729
    %v731 = vrot.slane %v730, 4
    %v732 = vmax.f32 %v730, %v731
    %v733 = vrot.slane %v732, 2
    %v734 = vmax.f32 %v732, %v733
    %v735 = vrot.slane %v734, 1
    %v736 = vmax.f32 %v734, %v735
    %v737 = vsel %vm673, %v665, -inf
    %v738 = vsel %vm673, %v670, -inf
    %v739 = vmax.f32 %v737, %v738
    %v740 = vrot.slane %v739, 4
    %v741 = vmax.f32 %v739, %v740
    %v742 = vrot.slane %v741, 2
    %v743 = vmax.f32 %v741, %v742
    %v744 = vrot.slane %v743, 1
    %v745 = vmax.f32 %v743, %v744
    %v746 = vlaneseq
    %v747 = vshrl.u32 %v746, 7
    %v748 = vadd.s32 %v747, 8
    %vm749 = vcmp.eq.f32.partialorder %v595, %v682
    %vm750 = vcmp.eq.f32.partialorder %v600, %v682
    %vm751 = vcmp.eq.f32.partialorder %v605, %v691
    %vm752 = vcmp.eq.f32.partialorder %v610, %v691
    %vm753 = vcmp.eq.f32.partialorder %v615, %v700
    %vm754 = vcmp.eq.f32.partialorder %v620, %v700
    %vm755 = vcmp.eq.f32.partialorder %v625, %v709
    %vm756 = vcmp.eq.f32.partialorder %v630, %v709
    %vm757 = vcmp.eq.f32.partialorder %v635, %v718
    %vm758 = vcmp.eq.f32.partialorder %v640, %v718
    %vm759 = vcmp.eq.f32.partialorder %v645, %v727
    %vm760 = vcmp.eq.f32.partialorder %v650, %v727
    %vm761 = vcmp.eq.f32.partialorder %v655, %v736
    %vm762 = vcmp.eq.f32.partialorder %v660, %v736
    %vm763 = vcmp.eq.f32.partialorder %v665, %v745
    %vm764 = vcmp.eq.f32.partialorder %v670, %v745
    %v765 = vsel %vm749, %v747, 16
    %v766 = vsel %vm750, %v748, 16
    %v767 = vsel %vm751, %v747, 16
    %v768 = vsel %vm752, %v748, 16
    %v769 = vsel %vm753, %v747, 16
    %v770 = vsel %vm754, %v748, 16
    %v771 = vsel %vm755, %v747, 16
    %v772 = vsel %vm756, %v748, 16
    %v773 = vsel %vm757, %v747, 16
    %v774 = vsel %vm758, %v748, 16
    %v775 = vsel %vm759, %v747, 16
    %v776 = vsel %vm760, %v748, 16
    %v777 = vsel %vm761, %v747, 16
    %v778 = vsel %vm762, %v748, 16
    %v779 = vsel %vm763, %v747, 16
    %v780 = vsel %vm764, %v748, 16
    %v781 = vsel %vm673, %v765, 2147483647
    %v782 = vsel %vm673, %v766, 2147483647
    %vm783 = vcmp.lt.s32.totalorder %v781, %v782
    %v784 = vsel %vm783, %v781, %v782
    %v785 = vrot.slane %v784, 4
    %vm786 = vcmp.lt.s32.totalorder %v784, %v785
    %v787 = vsel %vm786, %v784, %v785
    %v788 = vrot.slane %v787, 2
    %vm789 = vcmp.lt.s32.totalorder %v787, %v788
    %v790 = vsel %vm789, %v787, %v788
    %v791 = vrot.slane %v790, 1
    %vm792 = vcmp.lt.s32.totalorder %v790, %v791
    %v793 = vsel %vm792, %v790, %v791
    %v794 = vsel %vm673, %v767, 2147483647
    %v795 = vsel %vm673, %v768, 2147483647
    %vm796 = vcmp.lt.s32.totalorder %v794, %v795
    %v797 = vsel %vm796, %v794, %v795
    %v798 = vrot.slane %v797, 4
    %vm799 = vcmp.lt.s32.totalorder %v797, %v798
    %v800 = vsel %vm799, %v797, %v798
    %v801 = vrot.slane %v800, 2
    %vm802 = vcmp.lt.s32.totalorder %v800, %v801
    %v803 = vsel %vm802, %v800, %v801
    %v804 = vrot.slane %v803, 1
    %vm805 = vcmp.lt.s32.totalorder %v803, %v804
    %v806 = vsel %vm805, %v803, %v804
    %v807 = vsel %vm673, %v769, 2147483647
    %v808 = vsel %vm673, %v770, 2147483647
    %vm809 = vcmp.lt.s32.totalorder %v807, %v808
    %v810 = vsel %vm809, %v807, %v808
    %v811 = vrot.slane %v810, 4
    %vm812 = vcmp.lt.s32.totalorder %v810, %v811
    %v813 = vsel %vm812, %v810, %v811
    %v814 = vrot.slane %v813, 2
    %vm815 = vcmp.lt.s32.totalorder %v813, %v814
    %v816 = vsel %vm815, %v813, %v814
    %v817 = vrot.slane %v816, 1
    %vm818 = vcmp.lt.s32.totalorder %v816, %v817
    %v819 = vsel %vm818, %v816, %v817
    %v820 = vsel %vm673, %v771, 2147483647
    %v821 = vsel %vm673, %v772, 2147483647
    %vm822 = vcmp.lt.s32.totalorder %v820, %v821
    %v823 = vsel %vm822, %v820, %v821
    %v824 = vrot.slane %v823, 4
    %vm825 = vcmp.lt.s32.totalorder %v823, %v824
    %v826 = vsel %vm825, %v823, %v824
    %v827 = vrot.slane %v826, 2
    %vm828 = vcmp.lt.s32.totalorder %v826, %v827
    %v829 = vsel %vm828, %v826, %v827
    %v830 = vrot.slane %v829, 1
    %vm831 = vcmp.lt.s32.totalorder %v829, %v830
    %v832 = vsel %vm831, %v829, %v830
    %v833 = vsel %vm673, %v773, 2147483647
    %v834 = vsel %vm673, %v774, 2147483647
    %vm835 = vcmp.lt.s32.totalorder %v833, %v834
    %v836 = vsel %vm835, %v833, %v834
    %v837 = vrot.slane %v836, 4
    %vm838 = vcmp.lt.s32.totalorder %v836, %v837
    %v839 = vsel %vm838, %v836, %v837
    %v840 = vrot.slane %v839, 2
    %vm841 = vcmp.lt.s32.totalorder %v839, %v840
    %v842 = vsel %vm841, %v839, %v840
    %v843 = vrot.slane %v842, 1
    %vm844 = vcmp.lt.s32.totalorder %v842, %v843
    %v845 = vsel %vm844, %v842, %v843
    %v846 = vsel %vm673, %v775, 2147483647
    %v847 = vsel %vm673, %v776, 2147483647
    %vm848 = vcmp.lt.s32.totalorder %v846, %v847
    %v849 = vsel %vm848, %v846, %v847
    %v850 = vrot.slane %v849, 4
    %vm851 = vcmp.lt.s32.totalorder %v849, %v850
    %v852 = vsel %vm851, %v849, %v850
    %v853 = vrot.slane %v852, 2
    %vm854 = vcmp.lt.s32.totalorder %v852, %v853
    %v855 = vsel %vm854, %v852, %v853
    %v856 = vrot.slane %v855, 1
    %vm857 = vcmp.lt.s32.totalorder %v855, %v856
    %v858 = vsel %vm857, %v855, %v856
    %v859 = vsel %vm673, %v777, 2147483647
    %v860 = vsel %vm673, %v778, 2147483647
    %vm861 = vcmp.lt.s32.totalorder %v859, %v860
    %v862 = vsel %vm861, %v859, %v860
    %v863 = vrot.slane %v862, 4
    %vm864 = vcmp.lt.s32.totalorder %v862, %v863
    %v865 = vsel %vm864, %v862, %v863
    %v866 = vrot.slane %v865, 2
    %vm867 = vcmp.lt.s32.totalorder %v865, %v866
    %v868 = vsel %vm867, %v865, %v866
    %v869 = vrot.slane %v868, 1
    %vm870 = vcmp.lt.s32.totalorder %v868, %v869
    %v871 = vsel %vm870, %v868, %v869
    %v872 = vsel %vm673, %v779, 2147483647
    %v873 = vsel %vm673, %v780, 2147483647
    %vm874 = vcmp.lt.s32.totalorder %v872, %v873
    %v875 = vsel %vm874, %v872, %v873
    %v876 = vrot.slane %v875, 4
    %vm877 = vcmp.lt.s32.totalorder %v875, %v876
    %v878 = vsel %vm877, %v875, %v876
    %v879 = vrot.slane %v878, 2
    %vm880 = vcmp.lt.s32.totalorder %v878, %v879
    %v881 = vsel %vm880, %v878, %v879
    %v882 = vrot.slane %v881, 1
    %vm883 = vcmp.lt.s32.totalorder %v881, %v882
    %v884 = vsel %vm883, %v881, %v882
    %vm885 = vcmp.eq.s32.totalorder %v747, %v793
    %vm886 = vcmp.eq.s32.totalorder %v748, %v793
    %vm887 = vcmp.eq.s32.totalorder %v747, %v806
    %vm888 = vcmp.eq.s32.totalorder %v748, %v806
    %vm889 = vcmp.eq.s32.totalorder %v747, %v819
    %vm890 = vcmp.eq.s32.totalorder %v748, %v819
    %vm891 = vcmp.eq.s32.totalorder %v747, %v832
    %vm892 = vcmp.eq.s32.totalorder %v748, %v832
    %vm893 = vcmp.eq.s32.totalorder %v747, %v845
    %vm894 = vcmp.eq.s32.totalorder %v748, %v845
    %vm895 = vcmp.eq.s32.totalorder %v747, %v858
    %vm896 = vcmp.eq.s32.totalorder %v748, %v858
    %vm897 = vcmp.eq.s32.totalorder %v747, %v871
    %vm898 = vcmp.eq.s32.totalorder %v748, %v871
    %vm899 = vcmp.eq.s32.totalorder %v747, %v884
    %vm900 = vcmp.eq.s32.totalorder %v748, %v884
    %v901 = vsel %vm885, 1, 0
    %v902 = vsel %vm886, 1, 0
    %v903 = vsel %vm887, 1, 0
    %v904 = vsel %vm888, 1, 0
    %v905 = vsel %vm889, 1, 0
    %v906 = vsel %vm890, 1, 0
    %v907 = vsel %vm891, 1, 0
    %v908 = vsel %vm892, 1, 0
    %v909 = vsel %vm893, 1, 0
    %v910 = vsel %vm894, 1, 0
    %v911 = vsel %vm895, 1, 0
    %v912 = vsel %vm896, 1, 0
    %v913 = vsel %vm897, 1, 0
    %v914 = vsel %vm898, 1, 0
    %v915 = vsel %vm899, 1, 0
    %v916 = vsel %vm900, 1, 0
    %v917 = vcvt.s32.f32 %v901
    %v918 = vcvt.s32.f32 %v902
    %v919 = vcvt.s32.f32 %v903
    %v920 = vcvt.s32.f32 %v904
    %v921 = vcvt.s32.f32 %v905
    %v922 = vcvt.s32.f32 %v906
    %v923 = vcvt.s32.f32 %v907
    %v924 = vcvt.s32.f32 %v908
    %v925 = vcvt.s32.f32 %v909
    %v926 = vcvt.s32.f32 %v910
    %v927 = vcvt.s32.f32 %v911
    %v928 = vcvt.s32.f32 %v912
    %v929 = vcvt.s32.f32 %v913
    %v930 = vcvt.s32.f32 %v914
    %v931 = vcvt.s32.f32 %v915
    %v932 = vcvt.s32.f32 %v916
    %v933 = vsel %vm673, %v917, 0.0
    %934 = vadd.xlane.f32.xlu0 %v933
    %v935 = vpop.xlane.xlu0 %934
    %v936 = vsel %vm673, %v918, 0.0
    %937 = vadd.xlane.f32.xlu0 %v936
    %v938 = vpop.xlane.xlu0 %937
    %v939 = vsel %vm673, %v919, 0.0
    %940 = vadd.xlane.f32.xlu0 %v939
    %v941 = vpop.xlane.xlu0 %940
    %v942 = vsel %vm673, %v920, 0.0
    %943 = vadd.xlane.f32.xlu0 %v942
    %v944 = vpop.xlane.xlu0 %943
    %v945 = vsel %vm673, %v921, 0.0
    %946 = vadd.xlane.f32.xlu0 %v945
    %v947 = vpop.xlane.xlu0 %946
    %v948 = vsel %vm673, %v922, 0.0
    %949 = vadd.xlane.f32.xlu0 %v948
    %v950 = vpop.xlane.xlu0 %949
    %v951 = vsel %vm673, %v923, 0.0
    %952 = vadd.xlane.f32.xlu0 %v951
    %v953 = vpop.xlane.xlu0 %952
    %v954 = vsel %vm673, %v924, 0.0
    %955 = vadd.xlane.f32.xlu0 %v954
    %v956 = vpop.xlane.xlu0 %955
    %v957 = vsel %vm673, %v925, 0.0
    %958 = vadd.xlane.f32.xlu0 %v957
    %v959 = vpop.xlane.xlu0 %958
    %v960 = vsel %vm673, %v926, 0.0
    %961 = vadd.xlane.f32.xlu0 %v960
    %v962 = vpop.xlane.xlu0 %961
    %v963 = vsel %vm673, %v927, 0.0
    %964 = vadd.xlane.f32.xlu0 %v963
    %v965 = vpop.xlane.xlu0 %964
    %v966 = vsel %vm673, %v928, 0.0
    %967 = vadd.xlane.f32.xlu0 %v966
    %v968 = vpop.xlane.xlu0 %967
    %v969 = vsel %vm673, %v929, 0.0
    %970 = vadd.xlane.f32.xlu0 %v969
    %v971 = vpop.xlane.xlu0 %970
    %v972 = vsel %vm673, %v930, 0.0
    %973 = vadd.xlane.f32.xlu0 %v972
    %v974 = vpop.xlane.xlu0 %973
    %v975 = vsel %vm673, %v931, 0.0
    %976 = vadd.xlane.f32.xlu0 %v975
    %v977 = vpop.xlane.xlu0 %976
    %v978 = vsel %vm673, %v932, 0.0
    %979 = vadd.xlane.f32.xlu0 %v978
    %v980 = vpop.xlane.xlu0 %979
    %vm981 = vcmp.eq.s32.totalorder %v747, 0
    %v998 = vlaneseq
    %v999 = vand.u32 %v998, 127
    %v1000 = vlaneseq
    %v1001 = vshrl.u32 %v1000, 7
    %v1002 = vsub.s32 %v999, %v1001
    %v1003 = vrot.slane %v935, %v1002
    %v1004 = vadd.s32 %v999, 4294967288
    %v1005 = vlaneseq
    %v1006 = vshrl.u32 %v1005, 7
    %v1007 = vsub.s32 %v1004, %v1006
    %v1008 = vrot.slane %v938, %v1007
    %vm1009 = vcmask 130112
    %v1010 = vsel %vm1009, %v1008, %v1003
    %v1011 = vlaneseq
    %v1012 = vshrl.u32 %v1011, 7
    %v1013 = vsub.s32 %v999, %v1012
    %v1014 = vrot.slane %v941, %v1013
    %v1015 = vlaneseq
    %v1016 = vshrl.u32 %v1015, 7
    %v1017 = vsub.s32 %v1004, %v1016
    %v1018 = vrot.slane %v944, %v1017
    %v1019 = vsel %vm1009, %v1018, %v1014
    %v1020 = vlaneseq
    %v1021 = vshrl.u32 %v1020, 7
    %v1022 = vsub.s32 %v999, %v1021
    %v1023 = vrot.slane %v947, %v1022
    %v1024 = vlaneseq
    %v1025 = vshrl.u32 %v1024, 7
    %v1026 = vsub.s32 %v1004, %v1025
    %v1027 = vrot.slane %v950, %v1026
    %v1028 = vsel %vm1009, %v1027, %v1023
    %v1029 = vlaneseq
    %v1030 = vshrl.u32 %v1029, 7
    %v1031 = vsub.s32 %v999, %v1030
    %v1032 = vrot.slane %v953, %v1031
    %v1033 = vlaneseq
    %v1034 = vshrl.u32 %v1033, 7
    %v1035 = vsub.s32 %v1004, %v1034
    %v1036 = vrot.slane %v956, %v1035
    %v1037 = vsel %vm1009, %v1036, %v1032
    %v1038 = vlaneseq
    %v1039 = vshrl.u32 %v1038, 7
    %v1040 = vsub.s32 %v999, %v1039
    %v1041 = vrot.slane %v959, %v1040
    %v1042 = vlaneseq
    %v1043 = vshrl.u32 %v1042, 7
    %v1044 = vsub.s32 %v1004, %v1043
    %v1045 = vrot.slane %v962, %v1044
    %v1046 = vsel %vm1009, %v1045, %v1041
    %v1047 = vlaneseq
    %v1048 = vshrl.u32 %v1047, 7
    %v1049 = vsub.s32 %v999, %v1048
    %v1050 = vrot.slane %v965, %v1049
    %v1051 = vlaneseq
    %v1052 = vshrl.u32 %v1051, 7
    %v1053 = vsub.s32 %v1004, %v1052
    %v1054 = vrot.slane %v968, %v1053
    %v1055 = vsel %vm1009, %v1054, %v1050
    %v1056 = vlaneseq
    %v1057 = vshrl.u32 %v1056, 7
    %v1058 = vsub.s32 %v999, %v1057
    %v1059 = vrot.slane %v971, %v1058
    %v1060 = vlaneseq
    %v1061 = vshrl.u32 %v1060, 7
    %v1062 = vsub.s32 %v1004, %v1061
    %v1063 = vrot.slane %v974, %v1062
    %v1064 = vsel %vm1009, %v1063, %v1059
    %v1065 = vlaneseq
    %v1066 = vshrl.u32 %v1065, 7
    %v1067 = vsub.s32 %v999, %v1066
    %v1068 = vrot.slane %v977, %v1067
    %v1069 = vlaneseq
    %v1070 = vshrl.u32 %v1069, 7
    %v1071 = vsub.s32 %v1004, %v1070
    %v1072 = vrot.slane %v980, %v1071
    %v1073 = vsel %vm1009, %v1072, %v1068
    %vm1074 = vcmask 1041409
    %v1075 = vsel %vm1074, %v1019, %v1010
    %vm1076 = vcmask 1042434
    %v1077 = vsel %vm1076, %v1028, %v1075
    %vm1078 = vcmask 1043459
    %v1079 = vsel %vm1078, %v1037, %v1077
    %vm1080 = vcmask 1044484
    %v1081 = vsel %vm1080, %v1046, %v1079
    %vm1082 = vcmask 1045509
    %v1083 = vsel %vm1082, %v1055, %v1081
    %vm1084 = vcmask 1046534
    %v1085 = vsel %vm1084, %v1064, %v1083
    %vm1086 = vcmask 1047559
    %v1087 = vsel %vm1086, %v1073, %v1085
    %v1089 = vsel %vm981, %v1087, 0.0
    %vm1090 = vcmp.eq.s32.totalorder %v747, 1
    %v1091 = vsel %vm1090, %v1087, 0.0
    %vm1092 = vcmp.eq.s32.totalorder %v747, 2
    %v1093 = vsel %vm1092, %v1087, 0.0
    %vm1094 = vcmp.eq.s32.totalorder %v747, 3
    %v1095 = vsel %vm1094, %v1087, 0.0
    %vm1096 = vcmp.eq.s32.totalorder %v747, 4
    %v1097 = vsel %vm1096, %v1087, 0.0
    %vm1098 = vcmp.eq.s32.totalorder %v747, 5
    %v1099 = vsel %vm1098, %v1087, 0.0
    %vm1100 = vcmp.eq.s32.totalorder %v747, 6
    %v1101 = vsel %vm1100, %v1087, 0.0
    %vm1102 = vcmp.eq.s32.totalorder %v747, 7
    %v1103 = vsel %vm1102, %v1087, 0.0
    %1105 = vrot.lane.b32.xlu0 %v1091, 16
    %v1106 = vpop.permute.xlu0 %1105
    %1109 = vrot.lane.b32.xlu0 %v1093, 32
    %v1110 = vpop.permute.xlu0 %1109
    %1113 = vrot.lane.b32.xlu0 %v1095, 48
    %v1114 = vpop.permute.xlu0 %1113
    %1117 = vrot.lane.b32.xlu0 %v1097, 64
    %v1118 = vpop.permute.xlu0 %1117
    %1121 = vrot.lane.b32.xlu0 %v1099, 80
    %v1122 = vpop.permute.xlu0 %1121
    %1125 = vrot.lane.b32.xlu0 %v1101, 96
    %v1126 = vpop.permute.xlu0 %1125
    %1129 = vrot.lane.b32.xlu0 %v1103, 112
    %v1130 = vpop.permute.xlu0 %1129
    %vm1132 = vcmask 130048
    %v1133 = vsel %vm1132, %v1089, %v1106
    %v1134 = vsel %vm41, %v1133, %v1110
    %vm1135 = vcmask 392192
    %v1136 = vsel %vm1135, %v1134, %v1114
    %vm1137 = vcmask 523264
    %v1138 = vsel %vm1137, %v1136, %v1118
    %vm1139 = vcmask 654336
    %v1140 = vsel %vm1139, %v1138, %v1122
    %vm1141 = vcmask 785408
    %v1142 = vsel %vm1141, %v1140, %v1126
    %vm1143 = vcmask 916480
    %v1144 = vsel %vm1143, %v1142, %v1130
    %1145 = vmatprep.subr.mxu0 0.0
    %1146 = vmatpush1.msra.mxu0 %v21
    %1147 = vmatprep.subr.mxu0 0.0
    %1148 = vmatpush1.msra.mxu0 %v22
    %1149 = vmatprep.subr.mxu0 0.0
    %1150 = vmatpush1.msra.mxu0 %v23
    %1151 = vmatprep.subr.mxu0 0.0
    %1152 = vmatpush1.msra.mxu0 %v24
    %1153 = vmatprep.subr.mxu0 0.0
    %1154 = vmatpush1.msra.mxu0 %v25
    %1155 = vmatprep.subr.mxu0 0.0
    %1156 = vmatpush1.msra.mxu0 %v26
    %1157 = vmatprep.subr.mxu0 0.0
    %1158 = vmatpush1.msra.mxu0 %v27
    %1159 = vmatprep.subr.mxu0 0.0
    %1160 = vmatpush1.msra.mxu0 %v28
    %1161 = vmatprep.subr.mxu0 0.0
    %1162 = vmatpush1.msra.mxu0 %v29
    %1163 = vmatprep.subr.mxu0 0.0
    %1164 = vmatpush1.msra.mxu0 %v30
    %1165 = vmatprep.subr.mxu0 0.0
    %1166 = vmatpush1.msra.mxu0 %v31
    %1167 = vmatprep.subr.mxu0 0.0
    %1168 = vmatpush1.msra.mxu0 %v32
    %1169 = vmatprep.subr.mxu0 0.0
    %1170 = vmatpush1.msra.mxu0 %v33
    %1171 = vmatprep.subr.mxu0 0.0
    %1172 = vmatpush1.msra.mxu0 %v34
    %1173 = vmatprep.subr.mxu0 0.0
    %1174 = vmatpush1.msra.mxu0 %v35
    %1175 = vmatprep.subr.mxu0 0.0
    %1176 = vmatpush1.msra.mxu0 %v36
    %1177 = vmatprep.subr.mxu0 0.0
    %1178 = vmatpush1.msra.mxu0 0.0
    %1179 = vmatprep.subr.mxu0 0.0
    %1180 = vmatpush1.msra.mxu0 0.0
    %1181 = vmatprep.subr.mxu0 0.0
    %1182 = vmatpush1.msra.mxu0 0.0
    %1183 = vmatprep.subr.mxu0 0.0
    %1184 = vmatpush1.msra.mxu0 0.0
    %1185 = vmatprep.subr.mxu0 0.0
    %1186 = vmatpush1.msra.mxu0 0.0
    %1187 = vmatprep.subr.mxu0 0.0
    %1188 = vmatpush1.msra.mxu0 0.0
    %1189 = vmatprep.subr.mxu0 0.0
    %1190 = vmatpush1.msra.mxu0 0.0
    %1191 = vmatprep.subr.mxu0 0.0
    %1192 = vmatpush1.msra.mxu0 0.0
    %1193 = vmatprep.subr.mxu0 0.0
    %1194 = vmatpush1.msra.mxu0 0.0
    %1195 = vmatprep.subr.mxu0 0.0
    %1196 = vmatpush1.msra.mxu0 0.0
    %1197 = vmatprep.subr.mxu0 0.0
    %1198 = vmatpush1.msra.mxu0 0.0
    %1199 = vmatprep.subr.mxu0 0.0
    %1200 = vmatpush1.msra.mxu0 0.0
    %1201 = vmatprep.subr.mxu0 0.0
    %1202 = vmatpush1.msra.mxu0 0.0
    %1203 = vmatprep.subr.mxu0 0.0
    %1204 = vmatpush1.msra.mxu0 0.0
    %1205 = vmatprep.subr.mxu0 0.0
    %1206 = vmatpush1.msra.mxu0 0.0
    %1207 = vmatprep.subr.mxu0 0.0
    %1208 = vmatpush1.msra.mxu0 0.0
    %1209 = vmatprep.mubr.f32.mxu0 0.0
    %1210 = vmatmul.mubr.f32.gmra.mrb[0].mxu0 %v1144
    %v1211 = vpop.f32.mrb[0].mxu0
    %v1212 = vadd.f32 0.0, %v1211
    %v1213 = vpop.f32.mrb[0].mxu0
    %1214 = vdwg.mxu0
    %v1216 = vrot.slane %v1212, 1
    %1217 = vrot.lane.b32.xlu0 %v1216, 32
    %v1218 = vpop.permute.xlu0 %1217
    %v1220 = vrot.slane %v1212, 2
    %1221 = vrot.lane.b32.xlu0 %v1220, 64
    %v1222 = vpop.permute.xlu0 %1221
    %v1224 = vrot.slane %v1212, 3
    %1225 = vrot.lane.b32.xlu0 %v1224, 96
    %v1226 = vpop.permute.xlu0 %1225
    %v1228 = vsel %vm41, %v1212, %v1218
    %v1229 = vsel %vm1137, %v1228, %v1222
    %v1230 = vsel %vm1141, %v1229, %v1226
    %v1232 = vrot.slane %v1230, 3
    %vm1234 = vcmask 1040384
    %v1235 = vsel %vm1234, %v1230, %v1232
    %1236 = vst [vmem:[#allocation2] sm:$0x3] %v1235
    // Predicated region
    $region22: #{tpu_custom_call.1} parent=1 // pred_check
      _
    $region23: #{tpu_custom_call.1} parent=1 // pred_check_branch
      %1238 = sbr.rel (0) target = $region25
    $region24: #{tpu_custom_call.1} parent=1 // pred_region
      %s1240 = ssub.s32 32, 32
      %1241 = vsyncadd [#allocation3], %s1240
      %s1243 = sshll.u32 [#allocation2], 4
      %s1244 = int_to_ptr.vmem [resolvable:$true] %s1243
      %1246 = dma.vmem_to_hbm [thread:$0]  %s1244, 32, %s5, [#allocation3]
    $region25: #{tpu_custom_call.1} parent=1 // pred_fallthru
      _
    // Predicated region
    $region26: #{tpu_custom_call.1} parent=1 // pred_check
      _
    $region27: #{tpu_custom_call.1} parent=1 // pred_check_branch
      %1248 = sbr.rel (0) target = $region29
    $region28: #{tpu_custom_call.1} parent=1 // pred_region
      %1249 = dma.done [#allocation3], 32
    $region29: #{tpu_custom_call.1} parent=1 // pred_fallthru
      _
    %1250 = vsyncpa [#allocation3], 1

</llo_original>
